<compile_context>
chip_gen: v7x
topology: tpu7x:2x2x1
jax: 0.10.0
libtpu: 0.0.40
codegen_flags: <defaults>
</compile_context>

<pallas_src>
import jax
import jax.numpy as jnp
from jax.experimental import pallas as pl
from jax.experimental.pallas import tpu as pltpu


# ~6 MiB per block: with default double buffering (2 in + 2 out) that is ~24 MiB
# live VMEM, which fits the 48 MiB scoped limit we request on every generation.
_TARGET_BLOCK_BYTES = 6 * 1024 * 1024
_VMEM_LIMIT_BYTES = 48 * 1024 * 1024


def _h_sigmoid_kernel(x_ref, o_ref):
    x = x_ref[...]
    # h_sigmoid(x) = ReLU6(x + 3) / 6 = clip(x + 3, 0, 6) / 6  (true divide, torch parity)
    o_ref[...] = (jnp.clip(x + 3.0, 0.0, 6.0) / 6.0).astype(o_ref.dtype)


def _compiler_params():
    return pltpu.CompilerParams(
        dimension_semantics=(pltpu.PARALLEL,),
        vmem_limit_bytes=_VMEM_LIMIT_BYTES,
    )


def _run_2d(x2d, row_tile, lane):
    rows = x2d.shape[0]
    return pl.pallas_call(
        _h_sigmoid_kernel,
        out_shape=jax.ShapeDtypeStruct(x2d.shape, x2d.dtype),
        grid_spec=pltpu.PrefetchScalarGridSpec(
            num_scalar_prefetch=0,
            grid=(pl.cdiv(rows, row_tile),),
            in_specs=[pl.BlockSpec((row_tile, lane), lambda i: (i, 0))],
            out_specs=pl.BlockSpec((row_tile, lane), lambda i: (i, 0)),
        ),
        compiler_params=_compiler_params(),
    )(x2d)


def _run_flat(x2d, block_lanes):
    # x2d has shape (1, n); ragged last block along lanes is masked by Pallas.
    n = x2d.shape[1]
    return pl.pallas_call(
        _h_sigmoid_kernel,
        out_shape=jax.ShapeDtypeStruct(x2d.shape, x2d.dtype),
        grid_spec=pltpu.PrefetchScalarGridSpec(
            num_scalar_prefetch=0,
            grid=(pl.cdiv(n, block_lanes),),
            in_specs=[pl.BlockSpec((1, block_lanes), lambda i: (0, i))],
            out_specs=pl.BlockSpec((1, block_lanes), lambda i: (0, i)),
        ),
        compiler_params=_compiler_params(),
    )(x2d)


def h_sigmoid(x):
    """Elementwise hard-sigmoid, matching torch ReLU6(x + 3) / 6 semantics."""
    orig_shape = x.shape
    if not jnp.issubdtype(x.dtype, jnp.floating):
        x = x.astype(jnp.float32)  # torch's /6 also returns float
    dtype = x.dtype
    n = x.size
    if n == 0:
        return x.reshape(orig_shape)

    flat = x.reshape(-1)
    itemsize = jnp.dtype(dtype).itemsize
    # Sublane multiple by dtype packing: 8 (f32), 16 (bf16), 32 (int8).
    sub = max(8, 32 // max(1, itemsize))

    if n % 128 == 0:
        # Lane-dense 2-D path (no padding needed): pick the widest lane count
        # dividing n so output stores stay unmasked and lane-dense.
        lane = 128
        for cand in (4096, 2048, 1024, 512, 256):
            if n % cand == 0:
                lane = cand
                break
        rows = n // lane
        x2d = flat.reshape(rows, lane)

        max_rows_per_block = max(1, _TARGET_BLOCK_BYTES // (lane * itemsize))
        if rows <= max_rows_per_block:
            # Single block equal to full array dims (always legal).
            row_tile = rows
        else:
            row_tile = max(sub, (max_rows_per_block // sub) * sub)
        out2d = _run_2d(x2d, row_tile, lane)
        return out2d.reshape(orig_shape)

    # Awkward element count: run directly over the flat (1, n) view with a
    # 128-aligned block; Pallas masks the ragged final block.  No host-side
    # jnp.pad / slice -> no extra HBM passes.
    x2d = flat.reshape(1, n)
    max_block_lanes = max(128, (_TARGET_BLOCK_BYTES // itemsize // 128) * 128)
    needed_lanes = 128 * pl.cdiv(n, 128)
    block_lanes = min(max_block_lanes, needed_lanes)
    out2d = _run_flat(x2d, block_lanes)
    return out2d.reshape(orig_shape)


def _reference(x):
    return jnp.clip(x + 3.0, 0.0, 6.0) / 6.0


if __name__ == "__main__":
    key = jax.random.PRNGKey(0)

    # Primary NCHW input, same convention as the PyTorch module.
    x = jax.random.normal(key, (2, 4, 16, 16), dtype=jnp.float32) * 4.0
    y = jax.block_until_ready(h_sigmoid(x))
    assert y.shape == x.shape
    assert jnp.allclose(y, _reference(x), atol=1e-6), "mismatch vs reference"

    # Awkward shape (element count not a multiple of 128) -> ragged flat path.
    x2 = jax.random.normal(jax.random.PRNGKey(1), (2, 3, 7, 7),
                           dtype=jnp.float32) * 4.0
    y2 = jax.block_until_ready(h_sigmoid(x2))
    assert y2.shape == x2.shape
    assert jnp.allclose(y2, _reference(x2), atol=1e-6), "mismatch vs reference"

    # bf16 exercise of the sublane-packing path.
    x3 = (jax.random.normal(jax.random.PRNGKey(2), (2, 8, 8, 32),
                            dtype=jnp.float32) * 4.0).astype(jnp.bfloat16)
    y3 = jax.block_until_ready(h_sigmoid(x3))
    assert y3.shape == x3.shape
    assert jnp.allclose(y3.astype(jnp.float32),
                        _reference(x3.astype(jnp.float32)), atol=2e-2), "bf16 mismatch"

    print("KERNEL_OK")
</pallas_src>

<mosaic_0001>
module attributes {stable_mosaic.version = 11 : i64} {
  func.func @_h_sigmoid_kernel(%arg0: i32, %arg1: memref<1x2048xf32, #tpu.memory_space<vmem>>, %arg2: memref<1x2048xf32, #tpu.memory_space<vmem>>) attributes {dimension_semantics = [#tpu.dimension_semantics<parallel>], iteration_bounds = array<i64: 1>, scalar_prefetch = 0 : i64, scratch_operands = 0 : i64, tpu.core_type = #tpu.core_type<tc>, window_params = [{transform_indices = @transform_0, window_bounds = array<i64: 1, 2048>}, {transform_indices = @transform_1, window_bounds = array<i64: 1, 2048>}]} {
    %c0 = arith.constant 0 : index
    %c0_0 = arith.constant 0 : index
    %0 = vector.load %arg1[%c0, %c0_0] : memref<1x2048xf32, #tpu.memory_space<vmem>>, vector<1x2048xf32>
    %cst = arith.constant 3.000000e+00 : f32
    %1 = vector.broadcast %cst : f32 to vector<1x2048xf32>
    %2 = arith.addf %0, %1 : vector<1x2048xf32>
    %cst_1 = arith.constant 0.000000e+00 : f32
    %cst_2 = arith.constant 6.000000e+00 : f32
    %3 = vector.broadcast %cst_1 : f32 to vector<1x2048xf32>
    %4 = arith.maximumf %3, %2 : vector<1x2048xf32>
    %5 = vector.broadcast %cst_2 : f32 to vector<1x2048xf32>
    %6 = arith.minimumf %5, %4 : vector<1x2048xf32>
    %cst_3 = arith.constant 6.000000e+00 : f32
    %7 = vector.broadcast %cst_3 : f32 to vector<1x2048xf32>
    %8 = arith.divf %6, %7 : vector<1x2048xf32>
    %c0_4 = arith.constant 0 : index
    %c0_5 = arith.constant 0 : index
    %9 = vector.load %arg2[%c0_4, %c0_5] : memref<1x2048xf32, #tpu.memory_space<vmem>>, vector<1x2048xf32>
    tpu.vector_store %arg2[%c0_4, %c0_5], %8 {strides = array<i32>} : memref<1x2048xf32, #tpu.memory_space<vmem>>, vector<1x2048xf32>,
    return
  }
  func.func @transform_0(%arg0: i32) -> (i32, i32) {
    %c0_i32 = arith.constant 0 : i32
    %c0_i32_0 = arith.constant 0 : i32
    return %arg0, %c0_i32 : i32, i32
  }
  func.func @transform_1(%arg0: i32) -> (i32, i32) {
    %c0_i32 = arith.constant 0 : i32
    %c0_i32_0 = arith.constant 0 : i32
    return %arg0, %c0_i32 : i32, i32
  }
}

</mosaic_0001>

<llo_original>
// kernel: tpu_custom_call.1
$region0: #{tpu_custom_call.1}
  #allocation0 [shape = 'u32[]', space=smem, size = 0x4, offset = 0x4, fixed_abs, tag = 'smem constant byte address 0x4 - core index']
  #allocation1 [shape = 'u32[144,128]{1,0:T(1,128)}', space=vmem, size = 0x12000, scoped, tag = 'internal scratch']
  %s0 = inlined_call_operand.hbm [shape: f32[1,2048], index: 0, kind: input, shape index: {}]
  %s1 = inlined_call_operand.hbm [shape: f32[1,2048], index: 1, kind: output, shape index: {}]
  %s2 = sld [smem:[#allocation0]]
  $region18: #{tpu_custom_call.1} parent=0
    _
  %s4 = ssub.s32 1, %s2
  %s5 = scalar_select 0, %s4, %s2
  $region1: #{tpu_custom_call.1} parent=0
    #allocation2 [shape = 'u8[8192]{0}', space=vmem, size = 0x2000, scoped, tag = 'input window, operand 0, single buffered']
    #allocation3 [shape = 's32[1]{0}', space=sflag, size = 0x4, scoped, tag = 'scoped memory for tpu_custom_call.1']
    #allocation4 [shape = 's32[1]{0}', space=sflag, size = 0x4, scoped, tag = 'scoped memory for tpu_custom_call.1']
    #allocation5 [shape = 'u8[8192]{0}', space=vmem, size = 0x2000, scoped, tag = 'output window, operand 0, single buffered']
    %6 = vsyncpa [#allocation3], 0
    %7 = vsyncpa [#allocation4], 0
    // Predicated region
    $region2: #{tpu_custom_call.1} parent=1 // pred_check
      _
    $region3: #{tpu_custom_call.1} parent=1 // pred_check_branch
      %9 = sbr.rel (0) target = $region5
    $region4: #{tpu_custom_call.1} parent=1 // pred_region
      %s11 = ssub.s32 256, 256
      %12 = vsyncadd [#allocation3], %s11
      %s14 = sshll.u32 [#allocation2], 4
      %s15 = int_to_ptr.vmem [resolvable:$true] %s14
      %17 = dma.hbm_to_vmem [thread:$0]  %s0, 256, %s15, [#allocation3]
    $region5: #{tpu_custom_call.1} parent=1 // pred_fallthru
      _
    // Predicated region
    $region6: #{tpu_custom_call.1} parent=1 // pred_check
      _
    $region7: #{tpu_custom_call.1} parent=1 // pred_check_branch
      %19 = sbr.rel (0) target = $region9
    $region8: #{tpu_custom_call.1} parent=1 // pred_region
      %20 = dma.done [#allocation3], 256
    $region9: #{tpu_custom_call.1} parent=1 // pred_fallthru
      _
    %v21 = vld [vmem:[#allocation2] sm:$0xff]
    %v22 = vld [vmem:[#allocation2 + $0x8] sm:$0xff]
    %v23 = vadd.f32 %v21, 3.0
    %v24 = vadd.f32 %v22, 3.0
    %v25 = vmax.f32 %v23, 0.0
    %v26 = vmax.f32 %v24, 0.0
    %v27 = vmin.f32 %v25, 6.0
    %v28 = vmin.f32 %v26, 6.0
    %v29 = vrcp.pop 6.0
    %v30 = vmul.f32 %v27, %v29
    %v31 = vmul.f32 %v28, %v29
    %32 = vst [vmem:[#allocation5] sm:$0xff] %v30
    %33 = vst [vmem:[#allocation5 + $0x8] sm:$0xff] %v31
    // Predicated region
    $region10: #{tpu_custom_call.1} parent=1 // pred_check
      _
    $region11: #{tpu_custom_call.1} parent=1 // pred_check_branch
      %35 = sbr.rel (0) target = $region13
    $region12: #{tpu_custom_call.1} parent=1 // pred_region
      %s37 = ssub.s32 256, 256
      %38 = vsyncadd [#allocation4], %s37
      %s40 = sshll.u32 [#allocation5], 4
      %s41 = int_to_ptr.vmem [resolvable:$true] %s40
      %43 = dma.vmem_to_hbm [thread:$0]  %s41, 256, %s1, [#allocation4]
    $region13: #{tpu_custom_call.1} parent=1 // pred_fallthru
      _
    // Predicated region
    $region14: #{tpu_custom_call.1} parent=1 // pred_check
      _
    $region15: #{tpu_custom_call.1} parent=1 // pred_check_branch
      %45 = sbr.rel (0) target = $region17
    $region16: #{tpu_custom_call.1} parent=1 // pred_region
      %46 = dma.done [#allocation4], 256
    $region17: #{tpu_custom_call.1} parent=1 // pred_fallthru
      _
    %47 = vsyncpa [#allocation3], 1
    %48 = vsyncpa [#allocation4], 1

</llo_original>
